<compile_context>
chip_gen: v5e
topology: v5e:2x2
jax: 0.10.0
libtpu: 0.0.40
codegen_flags: <defaults>
</compile_context>

<pallas_src>
import functools

import jax
import jax.numpy as jnp
from jax.experimental import pallas as pl
from jax.experimental.pallas import tpu as pltpu

BN_EPS = 1e-5


def _round_up(x, m):
    return ((x + m - 1) // m) * m


def _vmem_limit_bytes():
    cap = 64 * 1024 * 1024                      # conservative default (v7x physical VMEM)
    try:
        info = pltpu.get_tpu_info()
        cap = int(getattr(info, "vmem_capacity_bytes", cap))
    except Exception:
        pass
    return min(cap * 3 // 4, 100 * 1024 * 1024)  # ~96 MiB on v5e/v6e, ~48 MiB on v7x


def _plan_pass1(m, kp, coutp, in_bytes, budget):
    """Pick (TM, TK): keep TM at/above the MXU tile; tile K instead of shrinking TM."""
    tk_cands = [d for d in range(kp, 0, -128) if kp % d == 0]   # 128-multiples dividing Kp

    def ws(tm, tk):
        return (2 * tm * tk * in_bytes            # patch tile (double buffered)
                + 2 * tk * coutp * in_bytes       # weight tile (double buffered)
                + 2 * tm * coutp * in_bytes       # conv output tile (double buffered)
                + tm * coutp * 4                  # f32 accumulator scratch
                + 4 * 8 * coutp * 4)              # per-tile stat blocks

    for tm in (512, 256, 128):
        if tm > m:
            continue
        for tk in tk_cands:
            if ws(tm, tk) <= budget:
                return tm, tk
    # tiny M (or nothing fit): a single whole-M tile, smallest K tile
    return min(_round_up(m, 8), 256), tk_cands[-1]


def _plan_pass2(ho_wo, mp, coutp, in_bytes, budget):
    """Rows-per-tile for the NCHW-direct pass 2, or None -> fall back to flat layout."""
    per_row = coutp * (2 * in_bytes + 2 * 4)      # bf16/f32 in tile (dbl) + f32 out tile (dbl)
    cap = max(128, budget // per_row)
    cands = [d for d in range(128, ho_wo + 1, 128) if ho_wo % d == 0 and d <= cap]
    if cands:
        return max(cands)                          # lane-dense transposed tiles
    if (ho_wo % 8 == 0 or ho_wo == mp) and ho_wo * per_row <= 2 * budget:
        return ho_wo                               # whole-image tile (small spatial maps)
    return None


def _plan_rows_flat(mp, coutp, in_bytes, budget):
    per_row = coutp * (2 * in_bytes + 2 * 4)
    cap = max(8, budget // per_row)
    best = 8
    for d in range(8, min(mp, 4096) + 1, 8):
        if mp % d == 0 and d <= cap:
            best = d
    return best


# ---- Pass 1: conv-as-matmul (K-tiled, f32 accumulation) + per-M-tile BN partial sums ----
def _conv_stats_kernel(p_ref, w_ref, conv_ref, sum_ref, sq_ref, acc_ref):
    k = pl.program_id(1)

    @pl.when(k == 0)
    def _():
        acc_ref[...] = jnp.zeros_like(acc_ref)

    acc_ref[...] += jnp.dot(p_ref[...], w_ref[...], preferred_element_type=jnp.float32)

    @pl.when(k == pl.num_programs(1) - 1)
    def _():
        y = acc_ref[...]                                  # f32 (TM, CoutP)
        conv_ref[...] = y.astype(conv_ref.dtype)          # store intermediate in compute dtype
        s = jnp.sum(y, axis=0, keepdims=True)             # per-tile partial sums (disjoint blocks)
        sq = jnp.sum(y * y, axis=0, keepdims=True)
        sum_ref[0] = jnp.broadcast_to(s, sum_ref.shape[1:])
        sq_ref[0] = jnp.broadcast_to(sq, sq_ref.shape[1:])


# ---- Pass 2a: BN affine + ReLU, written as NCHW (in-kernel transpose per tile) ----
def _bn_relu_nchw_kernel(y_ref, scale_ref, bias_ref, o_ref):
    y = y_ref[...].astype(jnp.float32)                         # (THW, CoutP)
    z = jnp.maximum(y * scale_ref[...] + bias_ref[...], 0.0)
    o_ref[0] = z.T                                             # (CoutP, THW) slab -> NCHW


# ---- Pass 2b fallback: flat [M, CoutP] BN affine + ReLU ----
def _bn_relu_flat_kernel(y_ref, scale_ref, bias_ref, o_ref):
    y = y_ref[...].astype(jnp.float32)
    o_ref[...] = jnp.maximum(y * scale_ref[...] + bias_ref[...], 0.0)


def _im2col_nchw(x, k, stride, pad):
    """[N,C,H,W] -> ([N*Ho*Wo, C*k*k], Ho, Wo). Column order = (Cin, kh, kw)."""
    N, C, H, W = x.shape
    xp = jnp.pad(x, ((0, 0), (0, 0), (pad, pad), (pad, pad)))
    Ho = (H + 2 * pad - k) // stride + 1
    Wo = (W + 2 * pad - k) // stride + 1
    slabs = []
    for i in range(k):
        for j in range(k):
            slabs.append(xp[:, :, i:i + stride * Ho:stride, j:j + stride * Wo:stride])
    p = jnp.stack(slabs, axis=0).reshape(k, k, N, C, Ho, Wo)
    p = p.transpose(2, 4, 5, 3, 0, 1).reshape(N * Ho * Wo, C * k * k)
    return p, Ho, Wo


@functools.partial(jax.jit, static_argnames=("kernel_size", "stride", "padding", "compute_dtype"))
def encoder_block(x, conv_w, gamma, beta, *, kernel_size=4, stride=2, padding=1,
                  compute_dtype=jnp.bfloat16):
    """x: [N,Cin,H,W] f32; conv_w: [Cout,Cin,k,k]; gamma/beta: [Cout]. Returns NCHW f32."""
    N, Cin, H, W = x.shape
    Cout = conv_w.shape[0]
    in_bytes = jnp.dtype(compute_dtype).itemsize
    vmem_limit = _vmem_limit_bytes()
    budget = vmem_limit * 5 // 8

    # im2col in the matmul dtype (fused under this jit); bf16 halves its HBM traffic
    patches, Ho, Wo = _im2col_nchw(x.astype(compute_dtype), kernel_size, stride, padding)
    M, K = patches.shape
    HoWo = Ho * Wo

    # lane-dense padding: K, Cout -> multiples of 128
    Kp = _round_up(K, 128)
    CoutP = _round_up(Cout, 128)
    TM, TK = _plan_pass1(M, Kp, CoutP, in_bytes, budget)
    Mp = _round_up(M, TM)
    grid_m, grid_k = Mp // TM, Kp // TK

    patches_p = jnp.pad(patches, ((0, Mp - M), (0, Kp - K)))
    w_mat = conv_w.reshape(Cout, K).T.astype(compute_dtype)                  # [K, Cout]
    w_p = jnp.pad(w_mat, ((0, Kp - K), (0, CoutP - Cout)))
    gamma_p = jnp.pad(gamma.astype(jnp.float32), (0, CoutP - Cout))          # (CoutP,)
    beta_p = jnp.pad(beta.astype(jnp.float32), (0, CoutP - Cout))

    cost = pl.CostEstimate(
        flops=2 * Mp * Kp * CoutP,
        transcendentals=0,
        bytes_accessed=(Mp * Kp * in_bytes + grid_m * Kp * CoutP * in_bytes
                        + Mp * CoutP * in_bytes + 2 * grid_m * 8 * CoutP * 4),
    )

    conv_out, part_sum, part_sq = pl.pallas_call(
        _conv_stats_kernel,
        out_shape=(
            jax.ShapeDtypeStruct((Mp, CoutP), compute_dtype),      # conv intermediate (compute dtype)
            jax.ShapeDtypeStruct((grid_m, 8, CoutP), jnp.float32),  # per-M-tile partial sums
            jax.ShapeDtypeStruct((grid_m, 8, CoutP), jnp.float32),  # per-M-tile partial sum-of-squares
        ),
        grid=(grid_m, grid_k),
        in_specs=[
            pl.BlockSpec((TM, TK), lambda i, k: (i, k)),
            pl.BlockSpec((TK, CoutP), lambda i, k: (k, 0)),
        ],
        out_specs=(
            pl.BlockSpec((TM, CoutP), lambda i, k: (i, 0)),
            pl.BlockSpec((1, 8, CoutP), lambda i, k: (i, 0, 0)),
            pl.BlockSpec((1, 8, CoutP), lambda i, k: (i, 0, 0)),
        ),
        scratch_shapes=[pltpu.VMEM((TM, CoutP), jnp.float32)],
        compiler_params=pltpu.CompilerParams(
            dimension_semantics=("parallel", "arbitrary"),   # M-tiles independent (megacore on v7x)
            vmem_limit_bytes=vmem_limit,
        ),
        cost_estimate=cost,
    )(patches_p, w_p)

    # BatchNorm2d training-mode (biased) stats over the REAL M rows; padded rows contribute 0.
    # Per-tile partials combined here (better conditioned than a single serial running sum).
    ch_sum = jnp.sum(part_sum[:, 0, :], axis=0)
    ch_sq = jnp.sum(part_sq[:, 0, :], axis=0)
    mean = ch_sum / M
    var = jnp.maximum(ch_sq / M - mean * mean, 0.0)
    scale_v = gamma_p * jax.lax.rsqrt(var + BN_EPS)
    bias_v = beta_p - mean * scale_v
    scale = scale_v.reshape(1, CoutP)
    bias = bias_v.reshape(1, CoutP)

    thw = _plan_pass2(HoWo, Mp, CoutP, in_bytes, budget)
    if thw is not None:
        # Pass 2a: fused BN+ReLU with NCHW written directly (no trailing XLA transpose).
        blocks_per_img = HoWo // thw
        out3 = pl.pallas_call(
            _bn_relu_nchw_kernel,
            out_shape=jax.ShapeDtypeStruct((N, CoutP, HoWo), jnp.float32),
            grid=(N, blocks_per_img),
            in_specs=[
                pl.BlockSpec((thw, CoutP), lambda n, t: (n * blocks_per_img + t, 0)),
                pl.BlockSpec((1, CoutP), lambda n, t: (0, 0)),
                pl.BlockSpec((1, CoutP), lambda n, t: (0, 0)),
            ],
            out_specs=pl.BlockSpec((1, CoutP, thw), lambda n, t: (n, 0, t)),
            compiler_params=pltpu.CompilerParams(
                dimension_semantics=("parallel", "parallel"),
                vmem_limit_bytes=vmem_limit,
            ),
        )(conv_out, scale, bias)
        return out3[:, :Cout, :].reshape(N, Cout, Ho, Wo)

    # Pass 2b fallback: flat elementwise pass, NCHW relayout done by XLA.
    rows = _plan_rows_flat(Mp, CoutP, in_bytes, budget)
    out_flat = pl.pallas_call(
        _bn_relu_flat_kernel,
        out_shape=jax.ShapeDtypeStruct((Mp, CoutP), jnp.float32),
        grid=(Mp // rows,),
        in_specs=[
            pl.BlockSpec((rows, CoutP), lambda i: (i, 0)),
            pl.BlockSpec((1, CoutP), lambda i: (0, 0)),
            pl.BlockSpec((1, CoutP), lambda i: (0, 0)),
        ],
        out_specs=pl.BlockSpec((rows, CoutP), lambda i: (i, 0)),
        compiler_params=pltpu.CompilerParams(
            dimension_semantics=("parallel",),
            vmem_limit_bytes=vmem_limit,
        ),
    )(conv_out, scale, bias)
    return out_flat[:M, :Cout].reshape(N, Ho, Wo, Cout).transpose(0, 3, 1, 2)


def _reference(x, conv_w, gamma, beta, *, stride=2, padding=1, compute_dtype=jnp.float32):
    """Pure-JAX reference: conv2d + train-mode BN + ReLU (same matmul input dtype)."""
    y = jax.lax.conv_general_dilated(
        x.astype(compute_dtype), conv_w.astype(compute_dtype),
        window_strides=(stride, stride),
        padding=[(padding, padding), (padding, padding)],
        dimension_numbers=("NCHW", "OIHW", "NCHW"),
        preferred_element_type=jnp.float32)
    mean = jnp.mean(y, axis=(0, 2, 3), keepdims=True)
    var = jnp.mean((y - mean) ** 2, axis=(0, 2, 3), keepdims=True)
    yn = (y - mean) * jax.lax.rsqrt(var + BN_EPS)
    yn = yn * gamma.reshape(1, -1, 1, 1) + beta.reshape(1, -1, 1, 1)
    return jnp.maximum(yn, 0.0)


if __name__ == "__main__":
    key = jax.random.PRNGKey(0)
    k_x, k_w = jax.random.split(key)

    N, Cin, H, W = 2, 4, 16, 16
    Cout, ksize, stride, pad = 8, 4, 2, 1

    x = jax.random.normal(k_x, (N, Cin, H, W), dtype=jnp.float32)
    fan_in = Cin * ksize * ksize
    bound = 1.0 / jnp.sqrt(fan_in)
    conv_w = jax.random.uniform(k_w, (Cout, Cin, ksize, ksize),
                                minval=-bound, maxval=bound, dtype=jnp.float32)
    gamma = jnp.ones((Cout,), dtype=jnp.float32)   # BatchNorm2d default init
    beta = jnp.zeros((Cout,), dtype=jnp.float32)

    # fast path: bf16 matmul inputs + bf16 conv intermediate, f32 accumulation / BN math
    out_bf16 = jax.block_until_ready(
        encoder_block(x, conv_w, gamma, beta, kernel_size=ksize, stride=stride,
                      padding=pad, compute_dtype=jnp.bfloat16))
    ref_bf16 = jax.block_until_ready(
        _reference(x, conv_w, gamma, beta, stride=stride, padding=pad,
                   compute_dtype=jnp.bfloat16))
    assert out_bf16.shape == (N, Cout, H // 2, W // 2), out_bf16.shape
    assert jnp.allclose(out_bf16, ref_bf16, atol=1e-2, rtol=1e-2), \
        float(jnp.max(jnp.abs(out_bf16 - ref_bf16)))

    # full-f32 path: tight-tolerance sanity check (f32 intermediate)
    out_f32 = jax.block_until_ready(
        encoder_block(x, conv_w, gamma, beta, kernel_size=ksize, stride=stride,
                      padding=pad, compute_dtype=jnp.float32))
    ref_f32 = jax.block_until_ready(
        _reference(x, conv_w, gamma, beta, stride=stride, padding=pad,
                   compute_dtype=jnp.float32))
    assert jnp.allclose(out_f32, ref_f32, atol=1e-4, rtol=1e-4), \
        float(jnp.max(jnp.abs(out_f32 - ref_f32)))

    print("KERNEL_OK")
</pallas_src>

<mosaic_0001>
module attributes {stable_mosaic.version = 11 : i64} {
  func.func @_bn_relu_nchw_kernel(%arg0: i32, %arg1: i32, %arg2: memref<64x128xbf16, #tpu.memory_space<vmem>>, %arg3: memref<1x128xf32, #tpu.memory_space<vmem>>, %arg4: memref<1x128xf32, #tpu.memory_space<vmem>>, %arg5: memref<1x128x64xf32, #tpu.memory_space<vmem>>) attributes {dimension_semantics = [#tpu.dimension_semantics<parallel>, #tpu.dimension_semantics<parallel>], iteration_bounds = array<i64: 2, 1>, scalar_prefetch = 0 : i64, scratch_operands = 0 : i64, tpu.core_type = #tpu.core_type<tc>, window_params = [{transform_indices = @transform_0, window_bounds = array<i64: 64, 128>}, {pipeline_mode = #tpu.pipeline_mode<synchronous>, transform_indices = @transform_1, window_bounds = array<i64: 1, 128>}, {pipeline_mode = #tpu.pipeline_mode<synchronous>, transform_indices = @transform_2, window_bounds = array<i64: 1, 128>}, {transform_indices = @transform_3, window_bounds = array<i64: 1, 128, 64>}]} {
    %c0 = arith.constant 0 : index
    %c0_0 = arith.constant 0 : index
    %0 = vector.load %arg2[%c0, %c0_0] : memref<64x128xbf16, #tpu.memory_space<vmem>>, vector<64x128xbf16>
    %1 = arith.extf %0 : vector<64x128xbf16> to vector<64x128xf32>
    %c0_1 = arith.constant 0 : index
    %c0_2 = arith.constant 0 : index
    %2 = vector.load %arg3[%c0_1, %c0_2] : memref<1x128xf32, #tpu.memory_space<vmem>>, vector<1x128xf32>
    %3 = vector.broadcast %2 : vector<1x128xf32> to vector<64x128xf32>
    %4 = arith.mulf %1, %3 : vector<64x128xf32>
    %c0_3 = arith.constant 0 : index
    %c0_4 = arith.constant 0 : index
    %5 = vector.load %arg4[%c0_3, %c0_4] : memref<1x128xf32, #tpu.memory_space<vmem>>, vector<1x128xf32>
    %6 = vector.broadcast %5 : vector<1x128xf32> to vector<64x128xf32>
    %7 = arith.addf %4, %6 : vector<64x128xf32>
    %cst = arith.constant 0.000000e+00 : f32
    %8 = vector.broadcast %cst : f32 to vector<64x128xf32>
    %9 = arith.maximumf %7, %8 : vector<64x128xf32>
    %10 = tpu.transpose %9, [1, 0] : vector<64x128xf32> -> vector<128x64xf32>
    %c0_5 = arith.constant 0 : index
    %c0_6 = arith.constant 0 : index
    %c0_7 = arith.constant 0 : index
    %11 = vector.load %arg5[%c0_5, %c0_6, %c0_7] : memref<1x128x64xf32, #tpu.memory_space<vmem>>, vector<1x128x64xf32>
    %12 = vector.shape_cast %11 : vector<1x128x64xf32> to vector<128x64xf32>
    %13 = vector.shape_cast %10 : vector<128x64xf32> to vector<1x128x64xf32>
    tpu.vector_store %arg5[%c0_5, %c0_6, %c0_7], %13 {strides = array<i32>} : memref<1x128x64xf32, #tpu.memory_space<vmem>>, vector<1x128x64xf32>,
    return
  }
  func.func @transform_0(%arg0: i32, %arg1: i32) -> (i32, i32) {
    %c1_i32 = arith.constant 1 : i32
    %0 = arith.muli %arg0, %c1_i32 : i32
    %1 = arith.addi %0, %arg1 : i32
    %c0_i32 = arith.constant 0 : i32
    %c0_i32_0 = arith.constant 0 : i32
    return %1, %c0_i32 : i32, i32
  }
  func.func @transform_1(%arg0: i32, %arg1: i32) -> (i32, i32) {
    %c0_i32 = arith.constant 0 : i32
    %c0_i32_0 = arith.constant 0 : i32
    %c0_i32_1 = arith.constant 0 : i32
    return %c0_i32, %c0_i32_0 : i32, i32
  }
  func.func @transform_2(%arg0: i32, %arg1: i32) -> (i32, i32) {
    %c0_i32 = arith.constant 0 : i32
    %c0_i32_0 = arith.constant 0 : i32
    %c0_i32_1 = arith.constant 0 : i32
    return %c0_i32, %c0_i32_0 : i32, i32
  }
  func.func @transform_3(%arg0: i32, %arg1: i32) -> (i32, i32, i32) {
    %c0_i32 = arith.constant 0 : i32
    %c0_i32_0 = arith.constant 0 : i32
    return %arg0, %c0_i32, %arg1 : i32, i32, i32
  }
}

module attributes {stable_mosaic.version = 11 : i64} {
  func.func @_conv_stats_kernel(%arg0: i32, %arg1: i32, %arg2: memref<128x128xbf16, #tpu.memory_space<vmem>>, %arg3: memref<128x128xbf16, #tpu.memory_space<vmem>>, %arg4: memref<128x128xbf16, #tpu.memory_space<vmem>>, %arg5: memref<1x8x128xf32, #tpu.memory_space<vmem>>, %arg6: memref<1x8x128xf32, #tpu.memory_space<vmem>>, %arg7: memref<128x128xf32, #tpu.memory_space<vmem>>) attributes {dimension_semantics = [#tpu.dimension_semantics<parallel>, #tpu.dimension_semantics<arbitrary>], iteration_bounds = array<i64: 1, 1>, scalar_prefetch = 0 : i64, scratch_operands = 1 : i64, tpu.core_type = #tpu.core_type<tc>, window_params = [{transform_indices = @transform_0, window_bounds = array<i64: 128, 128>}, {transform_indices = @transform_1, window_bounds = array<i64: 128, 128>}, {transform_indices = @transform_2, window_bounds = array<i64: 128, 128>}, {transform_indices = @transform_3, window_bounds = array<i64: 1, 8, 128>}, {transform_indices = @transform_4, window_bounds = array<i64: 1, 8, 128>}]} {
    %c0_i32 = arith.constant 0 : i32
    %0 = arith.cmpi eq, %arg1, %c0_i32 : i32
    %1 = arith.extui %0 : i1 to i32
    %c0_i32_0 = arith.constant 0 : i32
    %2 = arith.cmpi ne, %1, %c0_i32_0 : i32
    scf.if %2 {
      %cst_10 = arith.constant 0.000000e+00 : f32
      %12 = vector.broadcast %cst_10 : f32 to vector<128x128xf32>
      %c0_11 = arith.constant 0 : index
      %c0_12 = arith.constant 0 : index
      %13 = vector.load %arg7[%c0_11, %c0_12] : memref<128x128xf32, #tpu.memory_space<vmem>>, vector<128x128xf32>
      tpu.vector_store %arg7[%c0_11, %c0_12], %12 {strides = array<i32>} : memref<128x128xf32, #tpu.memory_space<vmem>>, vector<128x128xf32>,
    } else {
    }
    %c0 = arith.constant 0 : index
    %c0_1 = arith.constant 0 : index
    %3 = vector.load %arg7[%c0, %c0_1] : memref<128x128xf32, #tpu.memory_space<vmem>>, vector<128x128xf32>
    %c0_2 = arith.constant 0 : index
    %c0_3 = arith.constant 0 : index
    %4 = vector.load %arg2[%c0_2, %c0_3] : memref<128x128xbf16, #tpu.memory_space<vmem>>, vector<128x128xbf16>
    %c0_4 = arith.constant 0 : index
    %c0_5 = arith.constant 0 : index
    %5 = vector.load %arg3[%c0_4, %c0_5] : memref<128x128xbf16, #tpu.memory_space<vmem>>, vector<128x128xbf16>
    %cst = arith.constant dense<0.000000e+00> : vector<128x128xf32>
    %6 = tpu.matmul %4, %5, %cst {dimension_numbers = #tpu.dot_dimension_numbers<[1], [0], [0], [1], [0, 0, 1, 1], [], []>} : vector<128x128xbf16>, vector<128x128xbf16>, vector<128x128xf32> -> vector<128x128xf32>
    %7 = arith.addf %3, %6 : vector<128x128xf32>
    %c0_6 = arith.constant 0 : index
    %c0_7 = arith.constant 0 : index
    %8 = vector.load %arg7[%c0_6, %c0_7] : memref<128x128xf32, #tpu.memory_space<vmem>>, vector<128x128xf32>
    tpu.vector_store %arg7[%c0_6, %c0_7], %7 {strides = array<i32>} : memref<128x128xf32, #tpu.memory_space<vmem>>, vector<128x128xf32>,
    %c0_i32_8 = arith.constant 0 : i32
    %9 = arith.cmpi eq, %arg1, %c0_i32_8 : i32
    %10 = arith.extui %9 : i1 to i32
    %c0_i32_9 = arith.constant 0 : i32
    %11 = arith.cmpi ne, %10, %c0_i32_9 : i32
    scf.if %11 {
      %c0_10 = arith.constant 0 : index
      %c0_11 = arith.constant 0 : index
      %12 = vector.load %arg7[%c0_10, %c0_11] : memref<128x128xf32, #tpu.memory_space<vmem>>, vector<128x128xf32>
      %13 = arith.truncf %12 : vector<128x128xf32> to vector<128x128xbf16>
      %c0_12 = arith.constant 0 : index
      %c0_13 = arith.constant 0 : index
      %14 = vector.load %arg4[%c0_12, %c0_13] : memref<128x128xbf16, #tpu.memory_space<vmem>>, vector<128x128xbf16>
      tpu.vector_store %arg4[%c0_12, %c0_13], %13 {strides = array<i32>} : memref<128x128xbf16, #tpu.memory_space<vmem>>, vector<128x128xbf16>,
      %cst_14 = arith.constant dense<0.000000e+00> : vector<128xf32>
      %15 = vector.multi_reduction <add>, %12, %cst_14 [0] : vector<128x128xf32> to vector<128xf32>
      %16 = vector.shape_cast %15 : vector<128xf32> to vector<1x128xf32>
      %17 = arith.mulf %12, %12 : vector<128x128xf32>
      %cst_15 = arith.constant dense<0.000000e+00> : vector<128xf32>
      %18 = vector.multi_reduction <add>, %17, %cst_15 [0] : vector<128x128xf32> to vector<128xf32>
      %19 = vector.shape_cast %18 : vector<128xf32> to vector<1x128xf32>
      %20 = vector.shape_cast %16 : vector<1x128xf32> to vector<1x128xf32>
      %21 = vector.broadcast %20 : vector<1x128xf32> to vector<8x128xf32>
      %c0_16 = arith.constant 0 : index
      %c0_17 = arith.constant 0 : index
      %c0_18 = arith.constant 0 : index
      %22 = vector.load %arg5[%c0_16, %c0_17, %c0_18] : memref<1x8x128xf32, #tpu.memory_space<vmem>>, vector<1x8x128xf32>
      %23 = vector.shape_cast %22 : vector<1x8x128xf32> to vector<8x128xf32>
      %24 = vector.shape_cast %21 : vector<8x128xf32> to vector<1x8x128xf32>
      tpu.vector_store %arg5[%c0_16, %c0_17, %c0_18], %24 {strides = array<i32>} : memref<1x8x128xf32, #tpu.memory_space<vmem>>, vector<1x8x128xf32>,
      %25 = vector.shape_cast %19 : vector<1x128xf32> to vector<1x128xf32>
      %26 = vector.broadcast %25 : vector<1x128xf32> to vector<8x128xf32>
      %c0_19 = arith.constant 0 : index
      %c0_20 = arith.constant 0 : index
      %c0_21 = arith.constant 0 : index
      %27 = vector.load %arg6[%c0_19, %c0_20, %c0_21] : memref<1x8x128xf32, #tpu.memory_space<vmem>>, vector<1x8x128xf32>
      %28 = vector.shape_cast %27 : vector<1x8x128xf32> to vector<8x128xf32>
      %29 = vector.shape_cast %26 : vector<8x128xf32> to vector<1x8x128xf32>
      tpu.vector_store %arg6[%c0_19, %c0_20, %c0_21], %29 {strides = array<i32>} : memref<1x8x128xf32, #tpu.memory_space<vmem>>, vector<1x8x128xf32>,
    } else {
    }
    return
  }
  func.func @transform_0(%arg0: i32, %arg1: i32) -> (i32, i32) {
    %c0_i32 = arith.constant 0 : i32
    return %arg0, %arg1 : i32, i32
  }
  func.func @transform_1(%arg0: i32, %arg1: i32) -> (i32, i32) {
    %c0_i32 = arith.constant 0 : i32
    %c0_i32_0 = arith.constant 0 : i32
    return %arg1, %c0_i32 : i32, i32
  }
  func.func @transform_2(%arg0: i32, %arg1: i32) -> (i32, i32) {
    %c0_i32 = arith.constant 0 : i32
    %c0_i32_0 = arith.constant 0 : i32
    return %arg0, %c0_i32 : i32, i32
  }
  func.func @transform_3(%arg0: i32, %arg1: i32) -> (i32, i32, i32) {
    %c0_i32 = arith.constant 0 : i32
    %c0_i32_0 = arith.constant 0 : i32
    %c0_i32_1 = arith.constant 0 : i32
    return %arg0, %c0_i32, %c0_i32_0 : i32, i32, i32
  }
  func.func @transform_4(%arg0: i32, %arg1: i32) -> (i32, i32, i32) {
    %c0_i32 = arith.constant 0 : i32
    %c0_i32_0 = arith.constant 0 : i32
    %c0_i32_1 = arith.constant 0 : i32
    return %arg0, %c0_i32, %c0_i32_0 : i32, i32, i32
  }
}

</mosaic_0001>

<llo_original>
// kernel: encoder_block.3
$region0: #{encoder_block.3}
  #allocation0 [shape = 'u32[]', space=smem, size = 0x4, offset = 0x4, fixed_abs, tag = 'smem constant byte address 0x4 - core index']
  #allocation1 [shape = 'u32[72,128]{1,0:T(1,128)}', space=vmem, size = 0x9000, scoped, tag = 'internal scratch']
  %s0 = inlined_call_operand.vmem [shape: bf16[128,128], index: 0, kind: input, shape index: {}]
  %s1 = inlined_call_operand.vmem [shape: f32[1,128], index: 1, kind: input, shape index: {}]
  %s2 = inlined_call_operand.vmem [shape: f32[1,128], index: 2, kind: input, shape index: {}]
  %s3 = inlined_call_operand.vmem [shape: f32[2,128,64], index: 3, kind: output, shape index: {}]
  %s4 = sld [smem:[#allocation0]]
  $region45: #{encoder_block.3} parent=0
    _
  %s6 = ssub.s32 1, %s4
  %s7 = scalar_select 0, %s6, %s4
  loop: start=0, step=1, limit=4
  $region2: #{encoder_block.3} parent=0 // loop_pre_header
    _
  $region3: #{encoder_block.3} parent=0 // loop_header
    %s9 = sphi 0, %s13
    %p10 = scmp.ge.s32.totalorder %s9, 4
    %s16 = sphi 0, %s28
    %s17 = sphi 0, %s24
    %s18 = sphi 0, %s16
    %s19 = sphi 0, %s17
    %s20 = sphi 0, %s18
    %s21 = sphi 0, %s19
    %s33 = sphi 0, %s35
    %s36 = sphi 0, %s33
    %s37 = sphi 0, %s36
    %s53 = sphi 0, %s37
    %s57 = sphi 0, %s57
    %s59 = sphi 0, %s57
    %s60 = sphi 0, %s59
    %s74 = sphi 0, %s60
    %s78 = sphi 0, %s78
    %s80 = sphi 0, %s78
    %s81 = sphi 0, %s80
    %s95 = sphi 0, %s81
    %s103 = sphi 0, %s105
    %s106 = sphi 0, %s103
    %s107 = sphi 0, %s106
    %s123 = sphi 0, %s107
  $region4: #{encoder_block.3} parent=0 // loop_header_branch
    %12 = sbr.rel (%p10) target = $region8
  $region5: #{encoder_block.3} parent=0 // loop_body
    %s14 = ssub.s32 %s9, 1
    %s15 = ssub.s32 %s9, 2
    %s22 = sadd.s32 1, %s17
    %p23 = scmp.ge.s32.totalorder %s22, 1
    %s24 = scalar_select %p23, 0, %s22
    %s25 = sadd.s32 1, %s16
    %s26 = scalar_select %p23, %s25, %s16
    %p27 = scmp.ge.s32.totalorder %s26, 2
    %s28 = scalar_select %p27, 0, %s26
    %s29 = sadd.s32 %s16, %s17
    %s30 = sadd.s32 %s28, %s24
    %s31 = ssub.s32 %s29, %s30
    %p32 = scmp.eq.s32.totalorder %s31, 0
    %s34 = sadd.s32 %s33, 1
    %s35 = scalar_select %p32, %s33, %s34
    %p38 = pneg %p32
    %p39 = scmp.eq.s32.totalorder %s9, 1
    %p40 = por %p38, %p39
    %p41 = scmp.ne.s32.totalorder %s33, %s36
    %p42 = scmp.eq.s32.totalorder %s9, 0
    %p43 = por %p41, %p42
    %p44 = scmp.ne.s32.totalorder %s33, %s36
    %p45 = scmp.eq.s32.totalorder %s14, 1
    %p46 = por %p44, %p45
    %p47 = scmp.ne.s32.totalorder %s36, %s37
    %p48 = scmp.eq.s32.totalorder %s14, 0
    %p49 = por %p47, %p48
    %p50 = scmp.ne.s32.totalorder %s36, %s37
    %p51 = scmp.eq.s32.totalorder %s15, 1
    %p52 = por %p50, %p51
    %p54 = scmp.ne.s32.totalorder %s37, %s53
    %p55 = scmp.eq.s32.totalorder %s15, 0
    %p56 = por %p54, %p55
    %s58 = sadd.s32 %s57, 1
    %p61 = scmp.eq.s32.totalorder %s9, 1
    %p62 = scmp.ne.s32.totalorder %s57, %s59
    %p63 = scmp.eq.s32.totalorder %s9, 0
    %p64 = por %p62, %p63
    %p65 = scmp.ne.s32.totalorder %s57, %s59
    %p66 = scmp.eq.s32.totalorder %s14, 1
    %p67 = por %p65, %p66
    %p68 = scmp.ne.s32.totalorder %s59, %s60
    %p69 = scmp.eq.s32.totalorder %s14, 0
    %p70 = por %p68, %p69
    %p71 = scmp.ne.s32.totalorder %s59, %s60
    %p72 = scmp.eq.s32.totalorder %s15, 1
    %p73 = por %p71, %p72
    %p75 = scmp.ne.s32.totalorder %s60, %s74
    %p76 = scmp.eq.s32.totalorder %s15, 0
    %p77 = por %p75, %p76
    %s79 = sadd.s32 %s78, 1
    %p82 = scmp.eq.s32.totalorder %s9, 1
    %p83 = scmp.ne.s32.totalorder %s78, %s80
    %p84 = scmp.eq.s32.totalorder %s9, 0
    %p85 = por %p83, %p84
    %p86 = scmp.ne.s32.totalorder %s78, %s80
    %p87 = scmp.eq.s32.totalorder %s14, 1
    %p88 = por %p86, %p87
    %p89 = scmp.ne.s32.totalorder %s80, %s81
    %p90 = scmp.eq.s32.totalorder %s14, 0
    %p91 = por %p89, %p90
    %p92 = scmp.ne.s32.totalorder %s80, %s81
    %p93 = scmp.eq.s32.totalorder %s15, 1
    %p94 = por %p92, %p93
    %p96 = scmp.ne.s32.totalorder %s81, %s95
    %p97 = scmp.eq.s32.totalorder %s15, 0
    %p98 = por %p96, %p97
    %s99 = ssub.s32 %s16, %s28
    %s100 = ssub.s32 %s17, %s24
    %s101 = sor.u32 %s99, %s100
    %p102 = scmp.eq.s32.totalorder %s101, 0
    %s104 = sadd.s32 %s103, 1
    %s105 = scalar_select %p102, %s103, %s104
    %p108 = pneg %p102
    %p109 = scmp.eq.s32.totalorder %s9, 1
    %p110 = por %p108, %p109
    %p111 = scmp.ne.s32.totalorder %s103, %s106
    %p112 = scmp.eq.s32.totalorder %s9, 0
    %p113 = por %p111, %p112
    %p114 = scmp.ne.s32.totalorder %s103, %s106
    %p115 = scmp.eq.s32.totalorder %s14, 1
    %p116 = por %p114, %p115
    %p117 = scmp.ne.s32.totalorder %s106, %s107
    %p118 = scmp.eq.s32.totalorder %s14, 0
    %p119 = por %p117, %p118
    %p120 = scmp.ne.s32.totalorder %s106, %s107
    %p121 = scmp.eq.s32.totalorder %s15, 1
    %p122 = por %p120, %p121
    %p124 = scmp.ne.s32.totalorder %s107, %s123
    %p125 = scmp.eq.s32.totalorder %s15, 0
    %p126 = por %p124, %p125
    %p127 = scmp.le.s32.totalorder 1, %s9
    %p128 = scmp.lt.s32.totalorder %s9, 3
    %p129 = pnand %p127, %p128
    %p130 = pneg %p129
    // Predicated region
    $region9: #{encoder_block.3} parent=5 // pred_check
      _
    $region10: #{encoder_block.3} parent=5 // pred_check_branch
      %132 = sbr.rel (%p129) target = $region12
    $region11: #{encoder_block.3} parent=5 // pred_region
      %s133 = ssub.s32 %s9, 1
      // Predicated region
      $region13: #{encoder_block.3} parent=11 // pred_check
        %p134 = pneg %p70
      $region14: #{encoder_block.3} parent=11 // pred_check_branch
        %136 = sbr.rel (%p134) target = $region16
      $region15: #{encoder_block.3} parent=11 // pred_region
        _
      $region16: #{encoder_block.3} parent=11 // pred_fallthru
        _
      // Predicated region
      $region17: #{encoder_block.3} parent=11 // pred_check
        %p137 = pneg %p91
      $region18: #{encoder_block.3} parent=11 // pred_check_branch
        %139 = sbr.rel (%p137) target = $region20
      $region19: #{encoder_block.3} parent=11 // pred_region
        _
      $region20: #{encoder_block.3} parent=11 // pred_fallthru
        _
    $region12: #{encoder_block.3} parent=5 // pred_fallthru
      _
    %p140 = scmp.lt.s32.totalorder %s9, 2
    // Predicated region
    $region21: #{encoder_block.3} parent=5 // pred_check
      %p141 = pneg %p140
    $region22: #{encoder_block.3} parent=5 // pred_check_branch
      %143 = sbr.rel (%p141) target = $region24
    $region23: #{encoder_block.3} parent=5 // pred_region
      // Predicated region
      $region25: #{encoder_block.3} parent=23 // pred_check
        %p144 = pneg %p43
      $region26: #{encoder_block.3} parent=23 // pred_check_branch
        %146 = sbr.rel (%p144) target = $region28
      $region27: #{encoder_block.3} parent=23 // pred_region
        %s147 = sadd.s32 %s16, %s17
        %s148 = smul.u32 8, %s147
        %p149 = scmp.lt.s32.totalorder %s148, 15
        %s150 = scalar_select %p149, %s148, 15
        %s151 = smul.addr %s150, 4
        %s152 = scalar_lea.vmem %s0, %s151
        %s153 = sadd.s32 %s16, %s17
        %s154 = smul.u32 8, %s153
      $region28: #{encoder_block.3} parent=23 // pred_fallthru
        _
    $region24: #{encoder_block.3} parent=5 // pred_fallthru
      _
    %p155 = scmp.le.s32.totalorder 1, %s9
    %p156 = scmp.lt.s32.totalorder %s9, 3
    %p157 = pnand %p155, %p156
    %p158 = pneg %p157
    // Predicated region
    $region29: #{encoder_block.3} parent=5 // pred_check
      _
    $region30: #{encoder_block.3} parent=5 // pred_check_branch
      %160 = sbr.rel (%p157) target = $region32
    $region31: #{encoder_block.3} parent=5 // pred_region
      %s161 = ssub.s32 %s9, 1
      %s162 = sadd.s32 %s18, %s19
      %s163 = smul.u32 8, %s162
      %p164 = scmp.lt.s32.totalorder %s163, 15
      %s165 = scalar_select %p164, %s163, 15
      %s166 = smul.addr %s165, 4
      %s167 = scalar_lea.vmem %s0, %s166
      %p168 = pneg %p49
      %p169 = pneg %p46
      %p170 = pneg %p70
      %p171 = pneg %p67
      %p172 = pneg %p91
      %p173 = pneg %p88
      %p174 = pneg %p119
      %p175 = pneg %p116
      %p176 = scmp.lt.s32.totalorder %s18, 1
      %s177 = scalar_select %p176, %s18, 1
      %p178 = scmp.lt.s32.totalorder %s19, 0
      %s179 = scalar_select %p178, %s19, 0
      %s180 = smul.addr %s177, 16
      %s181 = sadd.s32 %s179, %s180
      %s182 = smul.addr %s181, 8
      %s183 = scalar_lea.vmem %s3, %s182
      %s184 = sadd.s32 %s18, %s19
      %s185 = smul.u32 8, %s184
      %p186 = scmp.lt.s32.totalorder %s185, 15
      %s187 = scalar_select %p186, %s185, 15
      %s188 = smul.addr %s187, 4
      %s189 = scalar_lea.vmem %s0, %s188
      %s190 = sadd.s32 %s18, %s19
      %s191 = smul.u32 8, %s190
      %p192 = scmp.lt.s32.totalorder %s18, 1
      %s193 = scalar_select %p192, %s18, 1
      %p194 = scmp.lt.s32.totalorder %s19, 0
      %s195 = scalar_select %p194, %s19, 0
      %s196 = smul.addr %s193, 16
      %s197 = sadd.s32 %s195, %s196
      %s198 = smul.addr %s197, 8
      %s199 = scalar_lea.vmem %s3, %s198
      %v200 = vld [vmem:[%s189] sm:$0xf]
      %v201 = vld [vmem:[%s189 + $0x4] sm:$0xf]
      %v202 = vld [vmem:[%s189 + $0x8] sm:$0xf]
      %v203 = vld [vmem:[%s189 + $0xc] sm:$0xf]
      %v204 = vld [vmem:[%s189 + $0x10] sm:$0xf]
      %v205 = vld [vmem:[%s189 + $0x14] sm:$0xf]
      %v206 = vld [vmem:[%s189 + $0x18] sm:$0xf]
      %v207 = vld [vmem:[%s189 + $0x1c] sm:$0xf]
      %v208 = vunpack.c.l.bf16 %v200
      %v209 = vunpack.c.l.bf16 %v201
      %v210 = vunpack.c.l.bf16 %v202
      %v211 = vunpack.c.l.bf16 %v203
      %v212 = vunpack.c.l.bf16 %v204
      %v213 = vunpack.c.l.bf16 %v205
      %v214 = vunpack.c.l.bf16 %v206
      %v215 = vunpack.c.l.bf16 %v207
      %v216 = vld [vmem:[%s1] sm:$0x1]
      %v218 = vperm.slane %v216, 0
      %v220 = vmul.f32 %v208, %v218
      %v221 = vmul.f32 %v209, %v218
      %v222 = vmul.f32 %v210, %v218
      %v223 = vmul.f32 %v211, %v218
      %v224 = vmul.f32 %v212, %v218
      %v225 = vmul.f32 %v213, %v218
      %v226 = vmul.f32 %v214, %v218
      %v227 = vmul.f32 %v215, %v218
      %v228 = vld [vmem:[%s2] sm:$0x1]
      %v230 = vperm.slane %v228, 0
      %v232 = vadd.f32 %v220, %v230
      %v233 = vadd.f32 %v221, %v230
      %v234 = vadd.f32 %v222, %v230
      %v235 = vadd.f32 %v223, %v230
      %v236 = vadd.f32 %v224, %v230
      %v237 = vadd.f32 %v225, %v230
      %v238 = vadd.f32 %v226, %v230
      %v239 = vadd.f32 %v227, %v230
      %v240 = vmax.f32 %v232, 0.0
      %v241 = vmax.f32 %v233, 0.0
      %v242 = vmax.f32 %v234, 0.0
      %v243 = vmax.f32 %v235, 0.0
      %v244 = vmax.f32 %v236, 0.0
      %v245 = vmax.f32 %v237, 0.0
      %v246 = vmax.f32 %v238, 0.0
      %v247 = vmax.f32 %v239, 0.0
      %248 = vxpose.xlu0.b32.start [1/16] %v240, 128
      %249 = vxpose.xlu0.b32.cont [2/16] %v241, 128
      %250 = vxpose.xlu0.b32.cont [3/16] %v242, 128
      %251 = vxpose.xlu0.b32.cont [4/16] %v243, 128
      %252 = vxpose.xlu0.b32.cont [5/16] %v244, 128
      %253 = vxpose.xlu0.b32.cont [6/16] %v245, 128
      %254 = vxpose.xlu0.b32.cont [7/16] %v246, 128
      %255 = vxpose.xlu0.b32.cont [8/16] %v247, 128
      %256 = vxpose.xlu0.b32.cont [9/16] 0.0, 128
      %257 = vxpose.xlu0.b32.cont [10/16] 0.0, 128
      %258 = vxpose.xlu0.b32.cont [11/16] 0.0, 128
      %259 = vxpose.xlu0.b32.cont [12/16] 0.0, 128
      %260 = vxpose.xlu0.b32.cont [13/16] 0.0, 128
      %261 = vxpose.xlu0.b32.cont [14/16] 0.0, 128
      %262 = vxpose.xlu0.b32.cont [15/16] 0.0, 128
      %263 = vxpose.xlu0.b32.end [16/16] 0.0, 128
      %v264 = vpop.trf.xlu0
      %v265 = vpop.trf.xlu0
      %v266 = vpop.trf.xlu0
      %v267 = vpop.trf.xlu0
      %v268 = vpop.trf.xlu0
      %v269 = vpop.trf.xlu0
      %v270 = vpop.trf.xlu0
      %v271 = vpop.trf.xlu0
      %v272 = vpop.trf.xlu0
      %v273 = vpop.trf.xlu0
      %v274 = vpop.trf.xlu0
      %v275 = vpop.trf.xlu0
      %v276 = vpop.trf.xlu0
      %v277 = vpop.trf.xlu0
      %v278 = vpop.trf.xlu0
      %v279 = vpop.trf.xlu0
      %vm280 = vcmask 523264
      %281 = vst.msk [vmem:[%s199] sm:$0xff] %vm280, %v264
      %282 = vst.msk [vmem:[%s199 + $0x8] sm:$0xff] %vm280, %v265
      %283 = vst.msk [vmem:[%s199 + $0x10] sm:$0xff] %vm280, %v266
      %284 = vst.msk [vmem:[%s199 + $0x18] sm:$0xff] %vm280, %v267
      %285 = vst.msk [vmem:[%s199 + $0x20] sm:$0xff] %vm280, %v268
      %286 = vst.msk [vmem:[%s199 + $0x28] sm:$0xff] %vm280, %v269
      %287 = vst.msk [vmem:[%s199 + $0x30] sm:$0xff] %vm280, %v270
      %288 = vst.msk [vmem:[%s199 + $0x38] sm:$0xff] %vm280, %v271
      %289 = vst.msk [vmem:[%s199 + $0x40] sm:$0xff] %vm280, %v272
      %290 = vst.msk [vmem:[%s199 + $0x48] sm:$0xff] %vm280, %v273
      %291 = vst.msk [vmem:[%s199 + $0x50] sm:$0xff] %vm280, %v274
      %292 = vst.msk [vmem:[%s199 + $0x58] sm:$0xff] %vm280, %v275
      %293 = vst.msk [vmem:[%s199 + $0x60] sm:$0xff] %vm280, %v276
      %294 = vst.msk [vmem:[%s199 + $0x68] sm:$0xff] %vm280, %v277
      %295 = vst.msk [vmem:[%s199 + $0x70] sm:$0xff] %vm280, %v278
      %296 = vst.msk [vmem:[%s199 + $0x78] sm:$0xff] %vm280, %v279
      %p297 = scmp.lt.s32.totalorder %s18, 1
      %s298 = scalar_select %p297, %s18, 1
      %p299 = scmp.lt.s32.totalorder %s19, 0
      %s300 = scalar_select %p299, %s19, 0
      %s301 = smul.addr %s298, 16
      %s302 = sadd.s32 %s300, %s301
      %s303 = smul.addr %s302, 8
      %s304 = scalar_lea.vmem %s3, %s303
      // Predicated region
      $region33: #{encoder_block.3} parent=31 // pred_check
        %p305 = pneg %p116
      $region34: #{encoder_block.3} parent=31 // pred_check_branch
        %307 = sbr.rel (%p305) target = $region36
      $region35: #{encoder_block.3} parent=31 // pred_region
        _
      $region36: #{encoder_block.3} parent=31 // pred_fallthru
        _
    $region32: #{encoder_block.3} parent=5 // pred_fallthru
      _
    %p308 = scmp.le.s32.totalorder 2, %s9
    // Predicated region
    $region37: #{encoder_block.3} parent=5 // pred_check
      %p309 = pneg %p308
    $region38: #{encoder_block.3} parent=5 // pred_check_branch
      %311 = sbr.rel (%p309) target = $region40
    $region39: #{encoder_block.3} parent=5 // pred_region
      %s312 = ssub.s32 %s9, 2
      // Predicated region
      $region41: #{encoder_block.3} parent=39 // pred_check
        %p313 = pneg %p122
      $region42: #{encoder_block.3} parent=39 // pred_check_branch
        %315 = sbr.rel (%p313) target = $region44
      $region43: #{encoder_block.3} parent=39 // pred_region
        %p316 = scmp.lt.s32.totalorder %s20, 1
        %s317 = scalar_select %p316, %s20, 1
        %p318 = scmp.lt.s32.totalorder %s21, 0
        %s319 = scalar_select %p318, %s21, 0
        %s320 = smul.addr %s317, 16
        %s321 = sadd.s32 %s319, %s320
        %s322 = smul.addr %s321, 8
        %s323 = scalar_lea.vmem %s3, %s322
      $region44: #{encoder_block.3} parent=39 // pred_fallthru
        _
    $region40: #{encoder_block.3} parent=5 // pred_fallthru
      _
  $region6: #{encoder_block.3} parent=0 // loop_footer
    %s13 = sadd.s32 1, %s9
  $region7: #{encoder_block.3} parent=0 // loop_footer_branch
    %8 = sbr.rel target = $region3
  $region8: #{encoder_block.3} parent=0 // loop_exit
    _

// kernel: encoder_block.2
$region0: #{encoder_block.2}
  #allocation0 [shape = 'u32[]', space=smem, size = 0x4, offset = 0x4, fixed_abs, tag = 'smem constant byte address 0x4 - core index']
  #allocation1 [shape = 'u32[72,128]{1,0:T(1,128)}', space=vmem, size = 0x9000, scoped, tag = 'internal scratch']
  #allocation2 [shape = 'f32[128,128]{1,0:T(8,128)}', space=vmem, size = 0x10000, scoped, tag = 'scratch operand']
  %s0 = inlined_call_operand.vmem [shape: bf16[128,128], index: 0, kind: input, shape index: {}]
  %s1 = inlined_call_operand.vmem [shape: bf16[128,128], index: 1, kind: input, shape index: {}]
  %s2 = inlined_call_operand.vmem [shape: bf16[128,128], index: 2, kind: output, shape index: {0}]
  %s3 = inlined_call_operand.vmem [shape: f32[1,8,128], index: 3, kind: output, shape index: {1}]
  %s4 = inlined_call_operand.vmem [shape: f32[1,8,128], index: 4, kind: output, shape index: {2}]
  %5 = xla_tuple %s2, %s3, %s4
  %s6 = sld [smem:[#allocation0]]
  $region42: #{encoder_block.2} parent=0
    _
  %s8 = ssub.s32 1, %s6
  %s9 = scalar_select 0, %s8, %s6
  // Predicated region
  $region2: #{encoder_block.2} parent=0 // pred_check
    _
  $region3: #{encoder_block.2} parent=0 // pred_check_branch
    %11 = sbr.rel (0) target = $region5
  $region4: #{encoder_block.2} parent=0 // pred_region
    _
  $region5: #{encoder_block.2} parent=0 // pred_fallthru
    _
  // Predicated region
  $region6: #{encoder_block.2} parent=0 // pred_check
    _
  $region7: #{encoder_block.2} parent=0 // pred_check_branch
    %13 = sbr.rel (0) target = $region9
  $region8: #{encoder_block.2} parent=0 // pred_region
    _
  $region9: #{encoder_block.2} parent=0 // pred_fallthru
    _
  %p14 = scmp.eq.s32.totalorder 0, 0
  // Predicated region
  $region10: #{encoder_block.2} parent=0 // pred_check
    %p15 = pneg %p14
  $region11: #{encoder_block.2} parent=0 // pred_check_branch
    %17 = sbr.rel (%p15) target = $region13
  $region12: #{encoder_block.2} parent=0 // pred_region
    %18 = vst [vmem:[#allocation2] sm:$0xff] 0.0
    %19 = vst [vmem:[#allocation2 + $0x8] sm:$0xff] 0.0
    %20 = vst [vmem:[#allocation2 + $0x10] sm:$0xff] 0.0
    %21 = vst [vmem:[#allocation2 + $0x18] sm:$0xff] 0.0
    %22 = vst [vmem:[#allocation2 + $0x20] sm:$0xff] 0.0
    %23 = vst [vmem:[#allocation2 + $0x28] sm:$0xff] 0.0
    %24 = vst [vmem:[#allocation2 + $0x30] sm:$0xff] 0.0
    %25 = vst [vmem:[#allocation2 + $0x38] sm:$0xff] 0.0
    %26 = vst [vmem:[#allocation2 + $0x40] sm:$0xff] 0.0
    %27 = vst [vmem:[#allocation2 + $0x48] sm:$0xff] 0.0
    %28 = vst [vmem:[#allocation2 + $0x50] sm:$0xff] 0.0
    %29 = vst [vmem:[#allocation2 + $0x58] sm:$0xff] 0.0
    %30 = vst [vmem:[#allocation2 + $0x60] sm:$0xff] 0.0
    %31 = vst [vmem:[#allocation2 + $0x68] sm:$0xff] 0.0
    %32 = vst [vmem:[#allocation2 + $0x70] sm:$0xff] 0.0
    %33 = vst [vmem:[#allocation2 + $0x78] sm:$0xff] 0.0
  $region13: #{encoder_block.2} parent=0 // pred_fallthru
    _
  %v34 = vld [vmem:[#allocation2] sm:$0xff]
  %v35 = vld [vmem:[#allocation2 + $0x8] sm:$0xff]
  %v36 = vld [vmem:[#allocation2 + $0x10] sm:$0xff]
  %v37 = vld [vmem:[#allocation2 + $0x18] sm:$0xff]
  %v38 = vld [vmem:[#allocation2 + $0x20] sm:$0xff]
  %v39 = vld [vmem:[#allocation2 + $0x28] sm:$0xff]
  %v40 = vld [vmem:[#allocation2 + $0x30] sm:$0xff]
  %v41 = vld [vmem:[#allocation2 + $0x38] sm:$0xff]
  %v42 = vld [vmem:[#allocation2 + $0x40] sm:$0xff]
  %v43 = vld [vmem:[#allocation2 + $0x48] sm:$0xff]
  %v44 = vld [vmem:[#allocation2 + $0x50] sm:$0xff]
  %v45 = vld [vmem:[#allocation2 + $0x58] sm:$0xff]
  %v46 = vld [vmem:[#allocation2 + $0x60] sm:$0xff]
  %v47 = vld [vmem:[#allocation2 + $0x68] sm:$0xff]
  %v48 = vld [vmem:[#allocation2 + $0x70] sm:$0xff]
  %v49 = vld [vmem:[#allocation2 + $0x78] sm:$0xff]
  %v50 = vld [vmem:[%s0] sm:$0xf]
  %v51 = vld [vmem:[%s0 + $0x4] sm:$0xf]
  %v52 = vld [vmem:[%s0 + $0x8] sm:$0xf]
  %v53 = vld [vmem:[%s0 + $0xc] sm:$0xf]
  %v54 = vld [vmem:[%s0 + $0x10] sm:$0xf]
  %v55 = vld [vmem:[%s0 + $0x14] sm:$0xf]
  %v56 = vld [vmem:[%s0 + $0x18] sm:$0xf]
  %v57 = vld [vmem:[%s0 + $0x1c] sm:$0xf]
  %v58 = vld [vmem:[%s0 + $0x20] sm:$0xf]
  %v59 = vld [vmem:[%s0 + $0x24] sm:$0xf]
  %v60 = vld [vmem:[%s0 + $0x28] sm:$0xf]
  %v61 = vld [vmem:[%s0 + $0x2c] sm:$0xf]
  %v62 = vld [vmem:[%s0 + $0x30] sm:$0xf]
  %v63 = vld [vmem:[%s0 + $0x34] sm:$0xf]
  %v64 = vld [vmem:[%s0 + $0x38] sm:$0xf]
  %v65 = vld [vmem:[%s0 + $0x3c] sm:$0xf]
  %v66 = vld [vmem:[%s1] sm:$0xf]
  %v67 = vld [vmem:[%s1 + $0x4] sm:$0xf]
  %v68 = vld [vmem:[%s1 + $0x8] sm:$0xf]
  %v69 = vld [vmem:[%s1 + $0xc] sm:$0xf]
  %v70 = vld [vmem:[%s1 + $0x10] sm:$0xf]
  %v71 = vld [vmem:[%s1 + $0x14] sm:$0xf]
  %v72 = vld [vmem:[%s1 + $0x18] sm:$0xf]
  %v73 = vld [vmem:[%s1 + $0x1c] sm:$0xf]
  %v74 = vld [vmem:[%s1 + $0x20] sm:$0xf]
  %v75 = vld [vmem:[%s1 + $0x24] sm:$0xf]
  %v76 = vld [vmem:[%s1 + $0x28] sm:$0xf]
  %v77 = vld [vmem:[%s1 + $0x2c] sm:$0xf]
  %v78 = vld [vmem:[%s1 + $0x30] sm:$0xf]
  %v79 = vld [vmem:[%s1 + $0x34] sm:$0xf]
  %v80 = vld [vmem:[%s1 + $0x38] sm:$0xf]
  %v81 = vld [vmem:[%s1 + $0x3c] sm:$0xf]
  %v98 = vunpack.c.l.b16 %v50
  %v99 = vunpack.c.l.b16 %v51
  %v100 = vunpack.c.l.b16 %v52
  %v101 = vunpack.c.l.b16 %v53
  %v102 = vunpack.c.l.b16 %v54
  %v103 = vunpack.c.l.b16 %v55
  %v104 = vunpack.c.l.b16 %v56
  %v105 = vunpack.c.l.b16 %v57
  %v106 = vunpack.c.l.b16 %v58
  %v107 = vunpack.c.l.b16 %v59
  %v108 = vunpack.c.l.b16 %v60
  %v109 = vunpack.c.l.b16 %v61
  %v110 = vunpack.c.l.b16 %v62
  %v111 = vunpack.c.l.b16 %v63
  %v112 = vunpack.c.l.b16 %v64
  %v113 = vunpack.c.l.b16 %v65
  %v114 = vpack.c.b16 %v99, %v98
  %v115 = vpack.c.b16 %v101, %v100
  %v116 = vpack.c.b16 %v103, %v102
  %v117 = vpack.c.b16 %v105, %v104
  %v118 = vpack.c.b16 %v107, %v106
  %v119 = vpack.c.b16 %v109, %v108
  %v120 = vpack.c.b16 %v111, %v110
  %v121 = vpack.c.b16 %v113, %v112
  %v146 = vunpack.c.l.b16 %v66
  %v147 = vunpack.c.l.b16 %v67
  %v148 = vunpack.c.l.b16 %v68
  %v149 = vunpack.c.l.b16 %v69
  %v150 = vunpack.c.l.b16 %v70
  %v151 = vunpack.c.l.b16 %v71
  %v152 = vunpack.c.l.b16 %v72
  %v153 = vunpack.c.l.b16 %v73
  %v154 = vunpack.c.l.b16 %v74
  %v155 = vunpack.c.l.b16 %v75
  %v156 = vunpack.c.l.b16 %v76
  %v157 = vunpack.c.l.b16 %v77
  %v158 = vunpack.c.l.b16 %v78
  %v159 = vunpack.c.l.b16 %v79
  %v160 = vunpack.c.l.b16 %v80
  %v161 = vunpack.c.l.b16 %v81
  %v162 = vpack.c.b16 %v147, %v146
  %v163 = vpack.c.b16 %v149, %v148
  %v164 = vpack.c.b16 %v151, %v150
  %v165 = vpack.c.b16 %v153, %v152
  %v166 = vpack.c.b16 %v155, %v154
  %v167 = vpack.c.b16 %v157, %v156
  %v168 = vpack.c.b16 %v159, %v158
  %v169 = vpack.c.b16 %v161, %v160
  %178 = vmatpush.bf16.msra.mxu0 %v169
  %179 = vmatpush.bf16.msra.mxu0 %v168
  %180 = vmatpush.bf16.msra.mxu0 %v167
  %181 = vmatpush.bf16.msra.mxu0 %v166
  %182 = vmatpush.bf16.msra.mxu0 %v165
  %183 = vmatpush.bf16.msra.mxu0 %v164
  %184 = vmatpush.bf16.msra.mxu0 %v163
  %185 = vmatpush.bf16.msra.mxu0 %v162
  %186 = vmatmul.bf16.gmra.mxu0 %v114
  %v187 = vpop.f32.mrf.mxu0
  %v188 = vadd.f32 0.0, %v187
  %v189 = vpop.f32.mrf.mxu0
  %v190 = vadd.f32 0.0, %v189
  %191 = vmatmul.bf16.gmra.mxu0 %v115
  %v192 = vpop.f32.mrf.mxu0
  %v193 = vadd.f32 0.0, %v192
  %v194 = vpop.f32.mrf.mxu0
  %v195 = vadd.f32 0.0, %v194
  %196 = vmatmul.bf16.gmra.mxu0 %v116
  %v197 = vpop.f32.mrf.mxu0
  %v198 = vadd.f32 0.0, %v197
  %v199 = vpop.f32.mrf.mxu0
  %v200 = vadd.f32 0.0, %v199
  %201 = vmatmul.bf16.gmra.mxu0 %v117
  %v202 = vpop.f32.mrf.mxu0
  %v203 = vadd.f32 0.0, %v202
  %v204 = vpop.f32.mrf.mxu0
  %v205 = vadd.f32 0.0, %v204
  %206 = vmatmul.bf16.gmra.mxu0 %v118
  %v207 = vpop.f32.mrf.mxu0
  %v208 = vadd.f32 0.0, %v207
  %v209 = vpop.f32.mrf.mxu0
  %v210 = vadd.f32 0.0, %v209
  %211 = vmatmul.bf16.gmra.mxu0 %v119
  %v212 = vpop.f32.mrf.mxu0
  %v213 = vadd.f32 0.0, %v212
  %v214 = vpop.f32.mrf.mxu0
  %v215 = vadd.f32 0.0, %v214
  %216 = vmatmul.bf16.gmra.mxu0 %v120
  %v217 = vpop.f32.mrf.mxu0
  %v218 = vadd.f32 0.0, %v217
  %v219 = vpop.f32.mrf.mxu0
  %v220 = vadd.f32 0.0, %v219
  %221 = vmatmul.bf16.gmra.mxu0 %v121
  %v222 = vpop.f32.mrf.mxu0
  %v223 = vadd.f32 0.0, %v222
  %v224 = vpop.f32.mrf.mxu0
  %v225 = vadd.f32 0.0, %v224
  %226 = vdwg.mxu0
  %v227 = vadd.f32 %v34, %v188
  %v228 = vadd.f32 %v35, %v190
  %v229 = vadd.f32 %v36, %v193
  %v230 = vadd.f32 %v37, %v195
  %v231 = vadd.f32 %v38, %v198
  %v232 = vadd.f32 %v39, %v200
  %v233 = vadd.f32 %v40, %v203
  %v234 = vadd.f32 %v41, %v205
  %v235 = vadd.f32 %v42, %v208
  %v236 = vadd.f32 %v43, %v210
  %v237 = vadd.f32 %v44, %v213
  %v238 = vadd.f32 %v45, %v215
  %v239 = vadd.f32 %v46, %v218
  %v240 = vadd.f32 %v47, %v220
  %v241 = vadd.f32 %v48, %v223
  %v242 = vadd.f32 %v49, %v225
  %243 = vst [vmem:[#allocation2] sm:$0xff] %v227
  %244 = vst [vmem:[#allocation2 + $0x8] sm:$0xff] %v228
  %245 = vst [vmem:[#allocation2 + $0x10] sm:$0xff] %v229
  %246 = vst [vmem:[#allocation2 + $0x18] sm:$0xff] %v230
  %247 = vst [vmem:[#allocation2 + $0x20] sm:$0xff] %v231
  %248 = vst [vmem:[#allocation2 + $0x28] sm:$0xff] %v232
  %249 = vst [vmem:[#allocation2 + $0x30] sm:$0xff] %v233
  %250 = vst [vmem:[#allocation2 + $0x38] sm:$0xff] %v234
  %251 = vst [vmem:[#allocation2 + $0x40] sm:$0xff] %v235
  %252 = vst [vmem:[#allocation2 + $0x48] sm:$0xff] %v236
  %253 = vst [vmem:[#allocation2 + $0x50] sm:$0xff] %v237
  %254 = vst [vmem:[#allocation2 + $0x58] sm:$0xff] %v238
  %255 = vst [vmem:[#allocation2 + $0x60] sm:$0xff] %v239
  %256 = vst [vmem:[#allocation2 + $0x68] sm:$0xff] %v240
  %257 = vst [vmem:[#allocation2 + $0x70] sm:$0xff] %v241
  %258 = vst [vmem:[#allocation2 + $0x78] sm:$0xff] %v242
  // Predicated region
  $region14: #{encoder_block.2} parent=0 // pred_check
    %p259 = pneg %p14
  $region15: #{encoder_block.2} parent=0 // pred_check_branch
    %261 = sbr.rel (%p259) target = $region17
  $region16: #{encoder_block.2} parent=0 // pred_region
    %v262 = vld [vmem:[#allocation2] sm:$0xff]
    %v263 = vld [vmem:[#allocation2 + $0x8] sm:$0xff]
    %v264 = vld [vmem:[#allocation2 + $0x10] sm:$0xff]
    %v265 = vld [vmem:[#allocation2 + $0x18] sm:$0xff]
    %v266 = vld [vmem:[#allocation2 + $0x20] sm:$0xff]
    %v267 = vld [vmem:[#allocation2 + $0x28] sm:$0xff]
    %v268 = vld [vmem:[#allocation2 + $0x30] sm:$0xff]
    %v269 = vld [vmem:[#allocation2 + $0x38] sm:$0xff]
    %v270 = vld [vmem:[#allocation2 + $0x40] sm:$0xff]
    %v271 = vld [vmem:[#allocation2 + $0x48] sm:$0xff]
    %v272 = vld [vmem:[#allocation2 + $0x50] sm:$0xff]
    %v273 = vld [vmem:[#allocation2 + $0x58] sm:$0xff]
    %v274 = vld [vmem:[#allocation2 + $0x60] sm:$0xff]
    %v275 = vld [vmem:[#allocation2 + $0x68] sm:$0xff]
    %v276 = vld [vmem:[#allocation2 + $0x70] sm:$0xff]
    %v277 = vld [vmem:[#allocation2 + $0x78] sm:$0xff]
    %v278 = vpack.c.bf16 %v262, %v262
    %v279 = vpack.c.bf16 %v263, %v263
    %v280 = vpack.c.bf16 %v264, %v264
    %v281 = vpack.c.bf16 %v265, %v265
    %v282 = vpack.c.bf16 %v266, %v266
    %v283 = vpack.c.bf16 %v267, %v267
    %v284 = vpack.c.bf16 %v268, %v268
    %v285 = vpack.c.bf16 %v269, %v269
    %v286 = vpack.c.bf16 %v270, %v270
    %v287 = vpack.c.bf16 %v271, %v271
    %v288 = vpack.c.bf16 %v272, %v272
    %v289 = vpack.c.bf16 %v273, %v273
    %v290 = vpack.c.bf16 %v274, %v274
    %v291 = vpack.c.bf16 %v275, %v275
    %v292 = vpack.c.bf16 %v276, %v276
    %v293 = vpack.c.bf16 %v277, %v277
    %294 = vst [vmem:[%s2] sm:$0xf] %v278
    %295 = vst [vmem:[%s2 + $0x4] sm:$0xf] %v279
    %296 = vst [vmem:[%s2 + $0x8] sm:$0xf] %v280
    %297 = vst [vmem:[%s2 + $0xc] sm:$0xf] %v281
    %298 = vst [vmem:[%s2 + $0x10] sm:$0xf] %v282
    %299 = vst [vmem:[%s2 + $0x14] sm:$0xf] %v283
    %300 = vst [vmem:[%s2 + $0x18] sm:$0xf] %v284
    %301 = vst [vmem:[%s2 + $0x1c] sm:$0xf] %v285
    %302 = vst [vmem:[%s2 + $0x20] sm:$0xf] %v286
    %303 = vst [vmem:[%s2 + $0x24] sm:$0xf] %v287
    %304 = vst [vmem:[%s2 + $0x28] sm:$0xf] %v288
    %305 = vst [vmem:[%s2 + $0x2c] sm:$0xf] %v289
    %306 = vst [vmem:[%s2 + $0x30] sm:$0xf] %v290
    %307 = vst [vmem:[%s2 + $0x34] sm:$0xf] %v291
    %308 = vst [vmem:[%s2 + $0x38] sm:$0xf] %v292
    %309 = vst [vmem:[%s2 + $0x3c] sm:$0xf] %v293
    %v310 = vadd.f32 %v262, %v263
    %v311 = vadd.f32 %v310, %v264
    %v312 = vadd.f32 %v311, %v265
    %v313 = vadd.f32 %v312, %v266
    %v314 = vadd.f32 %v313, %v267
    %v315 = vadd.f32 %v314, %v268
    %v316 = vadd.f32 %v315, %v269
    %v317 = vadd.f32 %v316, %v270
    %v318 = vadd.f32 %v317, %v271
    %v319 = vadd.f32 %v318, %v272
    %v320 = vadd.f32 %v319, %v273
    %v321 = vadd.f32 %v320, %v274
    %v322 = vadd.f32 %v321, %v275
    %v323 = vadd.f32 %v322, %v276
    %v324 = vadd.f32 %v323, %v277
    %v325 = vrot.slane %v324, 4
    %v326 = vadd.f32 %v324, %v325
    %v327 = vrot.slane %v326, 2
    %v328 = vadd.f32 %v326, %v327
    %v329 = vrot.slane %v328, 1
    %v330 = vadd.f32 %v328, %v329
    %v331 = vmul.f32 %v262, %v262
    %v332 = vmul.f32 %v263, %v263
    %v333 = vmul.f32 %v264, %v264
    %v334 = vmul.f32 %v265, %v265
    %v335 = vmul.f32 %v266, %v266
    %v336 = vmul.f32 %v267, %v267
    %v337 = vmul.f32 %v268, %v268
    %v338 = vmul.f32 %v269, %v269
    %v339 = vmul.f32 %v270, %v270
    %v340 = vmul.f32 %v271, %v271
    %v341 = vmul.f32 %v272, %v272
    %v342 = vmul.f32 %v273, %v273
    %v343 = vmul.f32 %v274, %v274
    %v344 = vmul.f32 %v275, %v275
    %v345 = vmul.f32 %v276, %v276
    %v346 = vmul.f32 %v277, %v277
    %v347 = vadd.f32 %v331, %v332
    %v348 = vadd.f32 %v347, %v333
    %v349 = vadd.f32 %v348, %v334
    %v350 = vadd.f32 %v349, %v335
    %v351 = vadd.f32 %v350, %v336
    %v352 = vadd.f32 %v351, %v337
    %v353 = vadd.f32 %v352, %v338
    %v354 = vadd.f32 %v353, %v339
    %v355 = vadd.f32 %v354, %v340
    %v356 = vadd.f32 %v355, %v341
    %v357 = vadd.f32 %v356, %v342
    %v358 = vadd.f32 %v357, %v343
    %v359 = vadd.f32 %v358, %v344
    %v360 = vadd.f32 %v359, %v345
    %v361 = vadd.f32 %v360, %v346
    %v362 = vrot.slane %v361, 4
    %v363 = vadd.f32 %v361, %v362
    %v364 = vrot.slane %v363, 2
    %v365 = vadd.f32 %v363, %v364
    %v366 = vrot.slane %v365, 1
    %v367 = vadd.f32 %v365, %v366
    %368 = vst [vmem:[%s3] sm:$0xff] %v330
    %369 = vst [vmem:[%s4] sm:$0xff] %v367
  $region17: #{encoder_block.2} parent=0 // pred_fallthru
    _
  // Predicated region
  $region18: #{encoder_block.2} parent=0 // pred_check
    _
  $region19: #{encoder_block.2} parent=0 // pred_check_branch
    %371 = sbr.rel (0) target = $region21
  $region20: #{encoder_block.2} parent=0 // pred_region
    _
  $region21: #{encoder_block.2} parent=0 // pred_fallthru
    _
  // Predicated region
  $region22: #{encoder_block.2} parent=0 // pred_check
    _
  $region23: #{encoder_block.2} parent=0 // pred_check_branch
    %373 = sbr.rel (0) target = $region25
  $region24: #{encoder_block.2} parent=0 // pred_region
    _
  $region25: #{encoder_block.2} parent=0 // pred_fallthru
    _
  // Predicated region
  $region26: #{encoder_block.2} parent=0 // pred_check
    _
  $region27: #{encoder_block.2} parent=0 // pred_check_branch
    %375 = sbr.rel (0) target = $region29
  $region28: #{encoder_block.2} parent=0 // pred_region
    _
  $region29: #{encoder_block.2} parent=0 // pred_fallthru
    _
  // Predicated region
  $region30: #{encoder_block.2} parent=0 // pred_check
    _
  $region31: #{encoder_block.2} parent=0 // pred_check_branch
    %377 = sbr.rel (0) target = $region33
  $region32: #{encoder_block.2} parent=0 // pred_region
    _
  $region33: #{encoder_block.2} parent=0 // pred_fallthru
    _
  // Predicated region
  $region34: #{encoder_block.2} parent=0 // pred_check
    _
  $region35: #{encoder_block.2} parent=0 // pred_check_branch
    %379 = sbr.rel (0) target = $region37
  $region36: #{encoder_block.2} parent=0 // pred_region
    _
  $region37: #{encoder_block.2} parent=0 // pred_fallthru
    _
  // Predicated region
  $region38: #{encoder_block.2} parent=0 // pred_check
    _
  $region39: #{encoder_block.2} parent=0 // pred_check_branch
    %381 = sbr.rel (0) target = $region41
  $region40: #{encoder_block.2} parent=0 // pred_region
    _
  $region41: #{encoder_block.2} parent=0 // pred_fallthru
    _

</llo_original>
